<compile_context>
chip_gen: v5e
topology: v5e:2x2
jax: 0.10.0
libtpu: 0.0.40
codegen_flags: <defaults>
</compile_context>

<pallas_src>
import functools
import math

import jax
import jax.numpy as jnp
from jax.experimental import pallas as pl
from jax.experimental.pallas import tpu as pltpu

_LANE = 128
_SUBLANE = 8


def _round_up(x, m):
    return ((x + m - 1) // m) * m


def _pick_tile(dim, prefs):
    for p in prefs:
        if dim % p == 0:
            return p
    return dim


@functools.lru_cache(maxsize=None)
def _vmem_budgets():
    """Generation-aware (vmem_limit_bytes, fused_resident_budget_bytes)."""
    vmem_bytes = None
    try:
        info = pltpu.get_tpu_info()
        vmem_bytes = getattr(info, "vmem_capacity_bytes", None)
    except Exception:
        vmem_bytes = None
    if not vmem_bytes:
        vmem_bytes = 64 * 1024 * 1024            # conservative: v7x per-TC VMEM
    if vmem_bytes >= 128 * 1024 * 1024:          # v5e / v6e: 128 MiB physical
        return 100 * 1024 * 1024, 72 * 1024 * 1024
    return 48 * 1024 * 1024, 28 * 1024 * 1024    # v7x: 64 MiB physical


# ---------------------------------------------------------------------------
# Fused whole-MLP kernel: grid = (token tiles,), weights resident in VMEM.
# ---------------------------------------------------------------------------
def _fused_mlp_kernel(x_ref, *refs, num_layers):
    # refs = (w0, b0, w1, b1, ..., o_ref); weights (K, N), biases (1, N) f32.
    o_ref = refs[-1]
    h = x_ref[...]
    for i in range(num_layers):
        w = refs[2 * i][...]
        b = refs[2 * i + 1][...]
        h = jnp.dot(h.astype(w.dtype), w,
                    preferred_element_type=jnp.float32) + b
        if i < num_layers - 1:                  # ReLU on all but the last layer
            h = jnp.maximum(h, 0.0)
    o_ref[...] = h.astype(o_ref.dtype)


def _mlp_fused_call(xp, padded_params, tm, out_dtype, vmem_limit):
    mp, k0 = xp.shape
    num_layers = len(padded_params)
    n_last = padded_params[-1][0].shape[1]

    in_specs = [pl.BlockSpec((tm, k0), lambda i: (i, 0))]
    flat_args = []
    for w, b in padded_params:
        kp, np_ = w.shape
        # Constant index_map -> DMA'd once; Buffered(1) -> single-buffered,
        # halving the resident-weight VMEM footprint vs. default double-buffer.
        in_specs.append(pl.BlockSpec((kp, np_), lambda i: (0, 0),
                                     pipeline_mode=pl.Buffered(1)))
        in_specs.append(pl.BlockSpec((1, np_), lambda i: (0, 0),
                                     pipeline_mode=pl.Buffered(1)))
        flat_args.extend((w, b))

    kernel = functools.partial(_fused_mlp_kernel, num_layers=num_layers)
    return pl.pallas_call(
        kernel,
        out_shape=jax.ShapeDtypeStruct((mp, n_last), out_dtype),
        grid_spec=pltpu.PrefetchScalarGridSpec(
            num_scalar_prefetch=0,
            grid=(mp // tm,),
            in_specs=in_specs,
            out_specs=pl.BlockSpec((tm, n_last), lambda i: (i, 0)),
        ),
        compiler_params=pltpu.CompilerParams(
            dimension_semantics=("parallel",),
            vmem_limit_bytes=vmem_limit,
        ),
    )(xp, *flat_args)


# ---------------------------------------------------------------------------
# Fallback: per-layer tiled (M, N, K) matmul, epilogue-fused bias/ReLU.
# ---------------------------------------------------------------------------
def _tiled_linear_kernel_f32(x_ref, w_ref, b_ref, o_ref, *, apply_relu):
    # f32 output: accumulate directly into o_ref (its block index is constant
    # along k), no scratch accumulator needed.
    k = pl.program_id(2)

    @pl.when(k == 0)
    def _():
        o_ref[...] = jnp.zeros_like(o_ref)

    o_ref[...] += jnp.dot(x_ref[...], w_ref[...],
                          preferred_element_type=jnp.float32)

    @pl.when(k == pl.num_programs(2) - 1)
    def _():
        out = o_ref[...] + b_ref[...]
        if apply_relu:
            out = jnp.maximum(out, 0.0)
        o_ref[...] = out


def _tiled_linear_kernel_acc(x_ref, w_ref, b_ref, o_ref, acc_ref, *, apply_relu):
    # Non-f32 output: f32 VMEM accumulator, cast only in the epilogue.
    k = pl.program_id(2)

    @pl.when(k == 0)
    def _():
        acc_ref[...] = jnp.zeros_like(acc_ref)

    acc_ref[...] += jnp.dot(x_ref[...], w_ref[...],
                            preferred_element_type=jnp.float32)

    @pl.when(k == pl.num_programs(2) - 1)
    def _():
        out = acc_ref[...] + b_ref[...]
        if apply_relu:
            out = jnp.maximum(out, 0.0)
        o_ref[...] = out.astype(o_ref.dtype)


def _linear_tiled_call(x, w, b, *, apply_relu, tm, out_dtype, vmem_limit):
    m, kdim = x.shape
    _, n = w.shape
    tn = _pick_tile(n, (512, 256, 128))
    tk = _pick_tile(kdim, (512, 256, 128))

    if jnp.dtype(out_dtype) == jnp.dtype(jnp.float32):
        kernel = functools.partial(_tiled_linear_kernel_f32, apply_relu=apply_relu)
        scratch = []
    else:
        kernel = functools.partial(_tiled_linear_kernel_acc, apply_relu=apply_relu)
        scratch = [pltpu.VMEM((tm, tn), jnp.float32)]

    # TODO(synk): sweep pipeline_mode=pl.Buffered(3) on the weight spec if
    # profiling shows exposed DMA along the k axis at large tk*tn.
    return pl.pallas_call(
        kernel,
        out_shape=jax.ShapeDtypeStruct((m, n), out_dtype),
        grid_spec=pltpu.PrefetchScalarGridSpec(
            num_scalar_prefetch=0,
            grid=(m // tm, n // tn, kdim // tk),       # reduction axis last
            in_specs=[
                pl.BlockSpec((tm, tk), lambda i, j, k: (i, k)),
                pl.BlockSpec((tk, tn), lambda i, j, k: (k, j)),
                pl.BlockSpec((1, tn), lambda i, j, k: (0, j)),
            ],
            out_specs=pl.BlockSpec((tm, tn), lambda i, j, k: (i, j)),
            scratch_shapes=scratch,
        ),
        compiler_params=pltpu.CompilerParams(
            dimension_semantics=("parallel", "parallel", "arbitrary"),
            vmem_limit_bytes=vmem_limit,
        ),
    )(x, w, b)


# ---------------------------------------------------------------------------
# Parameters: init (mimics nn.Linear default init) + one-time padding/cast.
# ---------------------------------------------------------------------------
def init_mlp_params(key, input_dim, hidden_dim, output_dim, num_layers):
    """Weights stored as (in, out) == W.T relative to PyTorch's (out, in)."""
    h = [hidden_dim] * (num_layers - 1)
    params = []
    for n_in, n_out in zip([input_dim] + h, h + [output_dim]):
        key, kw, kb = jax.random.split(key, 3)
        bound = 1.0 / math.sqrt(n_in)
        w = jax.random.uniform(kw, (n_in, n_out), jnp.float32, -bound, bound)
        b = jax.random.uniform(kb, (n_out,), jnp.float32, -bound, bound)
        params.append((w, b))
    return params


class PreparedMLP:
    """Pre-padded / pre-cast parameters, hoisted out of the hot forward path."""

    def __init__(self, params, compute_dtype=jnp.float32):
        self.compute_dtype = jnp.dtype(compute_dtype)
        self.num_layers = len(params)
        self.in_dim = params[0][0].shape[0]
        self.out_dim = params[-1][0].shape[1]
        dims = [self.in_dim] + [w.shape[1] for w, _ in params]
        self.pdims = [_round_up(d, _LANE) for d in dims]   # lane-dense padding
        self.padded = []
        self.resident_bytes = 0
        for (w, b), kp, np_ in zip(params, self.pdims[:-1], self.pdims[1:]):
            wp = jnp.pad(w.astype(self.compute_dtype),
                         ((0, kp - w.shape[0]), (0, np_ - w.shape[1])))
            bp = jnp.pad(b.astype(jnp.float32),
                         (0, np_ - b.shape[0])).reshape(1, np_)
            self.padded.append((wp, bp))
            # Buffered(1): weights/biases are single-buffered resident tiles.
            self.resident_bytes += wp.size * wp.dtype.itemsize + bp.size * 4


# ---------------------------------------------------------------------------
# Forward.
# ---------------------------------------------------------------------------
def mlp_forward(x, params, *, compute_dtype=jnp.float32, tm=256, fuse=True):
    """x: [..., input_dim] -> [..., output_dim]; ReLU between all but last layer."""
    prepared = params if isinstance(params, PreparedMLP) else PreparedMLP(
        params, compute_dtype)
    cdt = prepared.compute_dtype

    lead = x.shape[:-1]
    in_dim = x.shape[-1]
    assert in_dim == prepared.in_dim
    x2d = x.reshape(-1, in_dim)
    m = x2d.shape[0]

    pdims = prepared.pdims
    max_pdim = max(pdims)
    vmem_limit, fuse_budget = _vmem_budgets()

    # Token-tile selection: big tiles fill the 256-row MXU (v6e/v7x) and
    # amortize per-grid-step overhead; shrink for very wide hidden layers to
    # bound vreg/VMEM pressure, and keep >= 2 grid steps for v7x's 2 TCs.
    mp0 = _round_up(max(m, _SUBLANE), _SUBLANE)
    tm_eff = min(tm, mp0)
    if max_pdim >= 4096:
        tm_eff = min(tm_eff, 128)
    elif max_pdim >= 2048:
        tm_eff = min(tm_eff, 256)
    if mp0 > _SUBLANE and _round_up(mp0, tm_eff) // tm_eff < 2:
        tm_eff = max(_SUBLANE, _round_up(mp0 // 2, _SUBLANE))
    mp = _round_up(mp0, tm_eff)

    # Single-pass pad + cast of the activation input (zero padding is exact).
    xp = jnp.pad(x2d.astype(cdt), ((0, mp - m), (0, pdims[0] - in_dim)))

    out_dtype = cdt   # lane-dense output in compute dtype; cast back at the end

    # VMEM estimate: single-buffered resident weights + double-buffered
    # streaming x/out tiles + headroom for per-layer f32 intermediates.
    est = prepared.resident_bytes
    est += 2 * tm_eff * (pdims[0] * jnp.dtype(cdt).itemsize
                         + pdims[-1] * jnp.dtype(out_dtype).itemsize)
    est += 3 * tm_eff * max_pdim * 4

    outp = None
    if fuse and est <= fuse_budget:
        try:
            outp = _mlp_fused_call(xp, prepared.padded, tm_eff, out_dtype,
                                   vmem_limit)
        except Exception:
            outp = None        # e.g. VMEM overshoot -> per-layer fallback
    if outp is None:
        h = xp
        for i, (wp, bp) in enumerate(prepared.padded):
            h = _linear_tiled_call(
                h, wp, bp,
                apply_relu=(i < prepared.num_layers - 1),
                tm=tm_eff, out_dtype=out_dtype, vmem_limit=vmem_limit)
        outp = h

    out = outp[:m, :prepared.out_dim].astype(x.dtype)
    return out.reshape(*lead, prepared.out_dim)


def mlp_reference(x, params):
    num_layers = len(params)
    for i, (w, b) in enumerate(params):
        x = x @ w + b
        if i < num_layers - 1:
            x = jax.nn.relu(x)
    return x


if __name__ == "__main__":
    key = jax.random.PRNGKey(0)
    input_dim, hidden_dim, output_dim, num_layers = 32, 64, 16, 3
    batch, seq = 2, 8

    kx, kp = jax.random.split(key)
    x = jax.random.normal(kx, (batch, seq, input_dim), jnp.float32)
    params = init_mlp_params(kp, input_dim, hidden_dim, output_dim, num_layers)

    ref = mlp_reference(x, params)

    # Primary path: fused whole-MLP kernel, f32 (params pre-padded once).
    prep_f32 = PreparedMLP(params, jnp.float32)
    out = jax.block_until_ready(mlp_forward(x, prep_f32))
    assert out.shape == (batch, seq, output_dim)
    assert jnp.allclose(out, ref, atol=1e-5, rtol=1e-5), "fused f32 mismatch"

    # Fallback path: per-layer tiled accumulator kernel, f32.
    out_tiled = jax.block_until_ready(mlp_forward(x, prep_f32, fuse=False))
    assert jnp.allclose(out_tiled, ref, atol=1e-5, rtol=1e-5), "tiled f32 mismatch"

    # bf16-MXU variant (v6e/v7x throughput path), looser tolerance.
    prep_bf16 = PreparedMLP(params, jnp.bfloat16)
    out_bf16 = jax.block_until_ready(mlp_forward(x, prep_bf16))
    assert jnp.allclose(out_bf16, ref, atol=5e-2, rtol=5e-2), "bf16 mismatch"

    print("KERNEL_OK")
</pallas_src>

<mosaic_0001>
module attributes {stable_mosaic.version = 11 : i64} {
  func.func @_fused_mlp_kernel(%arg0: i32, %arg1: memref<8x128xf32, #tpu.memory_space<vmem>>, %arg2: memref<128x128xf32, #tpu.memory_space<vmem>>, %arg3: memref<1x128xf32, #tpu.memory_space<vmem>>, %arg4: memref<128x128xf32, #tpu.memory_space<vmem>>, %arg5: memref<1x128xf32, #tpu.memory_space<vmem>>, %arg6: memref<128x128xf32, #tpu.memory_space<vmem>>, %arg7: memref<1x128xf32, #tpu.memory_space<vmem>>, %arg8: memref<8x128xf32, #tpu.memory_space<vmem>>) attributes {dimension_semantics = [#tpu.dimension_semantics<parallel>], iteration_bounds = array<i64: 2>, scalar_prefetch = 0 : i64, scratch_operands = 0 : i64, tpu.core_type = #tpu.core_type<tc>, window_params = [{transform_indices = @transform_0, window_bounds = array<i64: 8, 128>}, {pipeline_mode = #tpu.pipeline_mode<synchronous>, transform_indices = @transform_1, window_bounds = array<i64: 128, 128>}, {pipeline_mode = #tpu.pipeline_mode<synchronous>, transform_indices = @transform_2, window_bounds = array<i64: 1, 128>}, {pipeline_mode = #tpu.pipeline_mode<synchronous>, transform_indices = @transform_3, window_bounds = array<i64: 128, 128>}, {pipeline_mode = #tpu.pipeline_mode<synchronous>, transform_indices = @transform_4, window_bounds = array<i64: 1, 128>}, {pipeline_mode = #tpu.pipeline_mode<synchronous>, transform_indices = @transform_5, window_bounds = array<i64: 128, 128>}, {pipeline_mode = #tpu.pipeline_mode<synchronous>, transform_indices = @transform_6, window_bounds = array<i64: 1, 128>}, {transform_indices = @transform_7, window_bounds = array<i64: 8, 128>}]} {
    %c0 = arith.constant 0 : index
    %c0_0 = arith.constant 0 : index
    %0 = vector.load %arg1[%c0, %c0_0] : memref<8x128xf32, #tpu.memory_space<vmem>>, vector<8x128xf32>
    %c0_1 = arith.constant 0 : index
    %c0_2 = arith.constant 0 : index
    %1 = vector.load %arg2[%c0_1, %c0_2] : memref<128x128xf32, #tpu.memory_space<vmem>>, vector<128x128xf32>
    %c0_3 = arith.constant 0 : index
    %c0_4 = arith.constant 0 : index
    %2 = vector.load %arg3[%c0_3, %c0_4] : memref<1x128xf32, #tpu.memory_space<vmem>>, vector<1x128xf32>
    %cst = arith.constant dense<0.000000e+00> : vector<8x128xf32>
    %3 = tpu.matmul %0, %1, %cst {dimension_numbers = #tpu.dot_dimension_numbers<[1], [0], [0], [1], [0, 0, 1, 1], [], []>} : vector<8x128xf32>, vector<128x128xf32>, vector<8x128xf32> -> vector<8x128xf32>
    %4 = vector.broadcast %2 : vector<1x128xf32> to vector<8x128xf32>
    %5 = arith.addf %3, %4 : vector<8x128xf32>
    %cst_5 = arith.constant 0.000000e+00 : f32
    %6 = vector.broadcast %cst_5 : f32 to vector<8x128xf32>
    %7 = arith.maximumf %5, %6 : vector<8x128xf32>
    %c0_6 = arith.constant 0 : index
    %c0_7 = arith.constant 0 : index
    %8 = vector.load %arg4[%c0_6, %c0_7] : memref<128x128xf32, #tpu.memory_space<vmem>>, vector<128x128xf32>
    %c0_8 = arith.constant 0 : index
    %c0_9 = arith.constant 0 : index
    %9 = vector.load %arg5[%c0_8, %c0_9] : memref<1x128xf32, #tpu.memory_space<vmem>>, vector<1x128xf32>
    %cst_10 = arith.constant dense<0.000000e+00> : vector<8x128xf32>
    %10 = tpu.matmul %7, %8, %cst_10 {dimension_numbers = #tpu.dot_dimension_numbers<[1], [0], [0], [1], [0, 0, 1, 1], [], []>} : vector<8x128xf32>, vector<128x128xf32>, vector<8x128xf32> -> vector<8x128xf32>
    %11 = vector.broadcast %9 : vector<1x128xf32> to vector<8x128xf32>
    %12 = arith.addf %10, %11 : vector<8x128xf32>
    %cst_11 = arith.constant 0.000000e+00 : f32
    %13 = vector.broadcast %cst_11 : f32 to vector<8x128xf32>
    %14 = arith.maximumf %12, %13 : vector<8x128xf32>
    %c0_12 = arith.constant 0 : index
    %c0_13 = arith.constant 0 : index
    %15 = vector.load %arg6[%c0_12, %c0_13] : memref<128x128xf32, #tpu.memory_space<vmem>>, vector<128x128xf32>
    %c0_14 = arith.constant 0 : index
    %c0_15 = arith.constant 0 : index
    %16 = vector.load %arg7[%c0_14, %c0_15] : memref<1x128xf32, #tpu.memory_space<vmem>>, vector<1x128xf32>
    %cst_16 = arith.constant dense<0.000000e+00> : vector<8x128xf32>
    %17 = tpu.matmul %14, %15, %cst_16 {dimension_numbers = #tpu.dot_dimension_numbers<[1], [0], [0], [1], [0, 0, 1, 1], [], []>} : vector<8x128xf32>, vector<128x128xf32>, vector<8x128xf32> -> vector<8x128xf32>
    %18 = vector.broadcast %16 : vector<1x128xf32> to vector<8x128xf32>
    %19 = arith.addf %17, %18 : vector<8x128xf32>
    %c0_17 = arith.constant 0 : index
    %c0_18 = arith.constant 0 : index
    %20 = vector.load %arg8[%c0_17, %c0_18] : memref<8x128xf32, #tpu.memory_space<vmem>>, vector<8x128xf32>
    tpu.vector_store %arg8[%c0_17, %c0_18], %19 {strides = array<i32>} : memref<8x128xf32, #tpu.memory_space<vmem>>, vector<8x128xf32>,
    return
  }
  func.func @transform_0(%arg0: i32) -> (i32, i32) {
    %c0_i32 = arith.constant 0 : i32
    %c0_i32_0 = arith.constant 0 : i32
    return %arg0, %c0_i32 : i32, i32
  }
  func.func @transform_1(%arg0: i32) -> (i32, i32) {
    %c0_i32 = arith.constant 0 : i32
    %c0_i32_0 = arith.constant 0 : i32
    %c0_i32_1 = arith.constant 0 : i32
    return %c0_i32, %c0_i32_0 : i32, i32
  }
  func.func @transform_2(%arg0: i32) -> (i32, i32) {
    %c0_i32 = arith.constant 0 : i32
    %c0_i32_0 = arith.constant 0 : i32
    %c0_i32_1 = arith.constant 0 : i32
    return %c0_i32, %c0_i32_0 : i32, i32
  }
  func.func @transform_3(%arg0: i32) -> (i32, i32) {
    %c0_i32 = arith.constant 0 : i32
    %c0_i32_0 = arith.constant 0 : i32
    %c0_i32_1 = arith.constant 0 : i32
    return %c0_i32, %c0_i32_0 : i32, i32
  }
  func.func @transform_4(%arg0: i32) -> (i32, i32) {
    %c0_i32 = arith.constant 0 : i32
    %c0_i32_0 = arith.constant 0 : i32
    %c0_i32_1 = arith.constant 0 : i32
    return %c0_i32, %c0_i32_0 : i32, i32
  }
  func.func @transform_5(%arg0: i32) -> (i32, i32) {
    %c0_i32 = arith.constant 0 : i32
    %c0_i32_0 = arith.constant 0 : i32
    %c0_i32_1 = arith.constant 0 : i32
    return %c0_i32, %c0_i32_0 : i32, i32
  }
  func.func @transform_6(%arg0: i32) -> (i32, i32) {
    %c0_i32 = arith.constant 0 : i32
    %c0_i32_0 = arith.constant 0 : i32
    %c0_i32_1 = arith.constant 0 : i32
    return %c0_i32, %c0_i32_0 : i32, i32
  }
  func.func @transform_7(%arg0: i32) -> (i32, i32) {
    %c0_i32 = arith.constant 0 : i32
    %c0_i32_0 = arith.constant 0 : i32
    return %arg0, %c0_i32 : i32, i32
  }
}

module attributes {stable_mosaic.version = 11 : i64} {
  func.func @_tiled_linear_kernel_f32(%arg0: i32, %arg1: i32, %arg2: i32, %arg3: memref<8x128xf32, #tpu.memory_space<vmem>>, %arg4: memref<128x128xf32, #tpu.memory_space<vmem>>, %arg5: memref<1x128xf32, #tpu.memory_space<vmem>>, %arg6: memref<8x128xf32, #tpu.memory_space<vmem>>) attributes {dimension_semantics = [#tpu.dimension_semantics<parallel>, #tpu.dimension_semantics<parallel>, #tpu.dimension_semantics<arbitrary>], iteration_bounds = array<i64: 2, 1, 1>, scalar_prefetch = 0 : i64, scratch_operands = 0 : i64, tpu.core_type = #tpu.core_type<tc>, window_params = [{transform_indices = @transform_0, window_bounds = array<i64: 8, 128>}, {transform_indices = @transform_1, window_bounds = array<i64: 128, 128>}, {transform_indices = @transform_2, window_bounds = array<i64: 1, 128>}, {transform_indices = @transform_3, window_bounds = array<i64: 8, 128>}]} {
    %c0_i32 = arith.constant 0 : i32
    %0 = arith.cmpi eq, %arg2, %c0_i32 : i32
    %1 = arith.extui %0 : i1 to i32
    %c0_i32_0 = arith.constant 0 : i32
    %2 = arith.cmpi ne, %1, %c0_i32_0 : i32
    scf.if %2 {
      %cst_10 = arith.constant 0.000000e+00 : f32
      %12 = vector.broadcast %cst_10 : f32 to vector<8x128xf32>
      %c0_11 = arith.constant 0 : index
      %c0_12 = arith.constant 0 : index
      %13 = vector.load %arg6[%c0_11, %c0_12] : memref<8x128xf32, #tpu.memory_space<vmem>>, vector<8x128xf32>
      tpu.vector_store %arg6[%c0_11, %c0_12], %12 {strides = array<i32>} : memref<8x128xf32, #tpu.memory_space<vmem>>, vector<8x128xf32>,
    } else {
    }
    %c0 = arith.constant 0 : index
    %c0_1 = arith.constant 0 : index
    %3 = vector.load %arg6[%c0, %c0_1] : memref<8x128xf32, #tpu.memory_space<vmem>>, vector<8x128xf32>
    %c0_2 = arith.constant 0 : index
    %c0_3 = arith.constant 0 : index
    %4 = vector.load %arg3[%c0_2, %c0_3] : memref<8x128xf32, #tpu.memory_space<vmem>>, vector<8x128xf32>
    %c0_4 = arith.constant 0 : index
    %c0_5 = arith.constant 0 : index
    %5 = vector.load %arg4[%c0_4, %c0_5] : memref<128x128xf32, #tpu.memory_space<vmem>>, vector<128x128xf32>
    %cst = arith.constant dense<0.000000e+00> : vector<8x128xf32>
    %6 = tpu.matmul %4, %5, %cst {dimension_numbers = #tpu.dot_dimension_numbers<[1], [0], [0], [1], [0, 0, 1, 1], [], []>} : vector<8x128xf32>, vector<128x128xf32>, vector<8x128xf32> -> vector<8x128xf32>
    %7 = arith.addf %3, %6 : vector<8x128xf32>
    %c0_6 = arith.constant 0 : index
    %c0_7 = arith.constant 0 : index
    %8 = vector.load %arg6[%c0_6, %c0_7] : memref<8x128xf32, #tpu.memory_space<vmem>>, vector<8x128xf32>
    tpu.vector_store %arg6[%c0_6, %c0_7], %7 {strides = array<i32>} : memref<8x128xf32, #tpu.memory_space<vmem>>, vector<8x128xf32>,
    %c0_i32_8 = arith.constant 0 : i32
    %9 = arith.cmpi eq, %arg2, %c0_i32_8 : i32
    %10 = arith.extui %9 : i1 to i32
    %c0_i32_9 = arith.constant 0 : i32
    %11 = arith.cmpi ne, %10, %c0_i32_9 : i32
    scf.if %11 {
      %c0_10 = arith.constant 0 : index
      %c0_11 = arith.constant 0 : index
      %12 = vector.load %arg6[%c0_10, %c0_11] : memref<8x128xf32, #tpu.memory_space<vmem>>, vector<8x128xf32>
      %c0_12 = arith.constant 0 : index
      %c0_13 = arith.constant 0 : index
      %13 = vector.load %arg5[%c0_12, %c0_13] : memref<1x128xf32, #tpu.memory_space<vmem>>, vector<1x128xf32>
      %14 = vector.broadcast %13 : vector<1x128xf32> to vector<8x128xf32>
      %15 = arith.addf %12, %14 : vector<8x128xf32>
      %cst_14 = arith.constant 0.000000e+00 : f32
      %16 = vector.broadcast %cst_14 : f32 to vector<8x128xf32>
      %17 = arith.maximumf %15, %16 : vector<8x128xf32>
      %c0_15 = arith.constant 0 : index
      %c0_16 = arith.constant 0 : index
      %18 = vector.load %arg6[%c0_15, %c0_16] : memref<8x128xf32, #tpu.memory_space<vmem>>, vector<8x128xf32>
      tpu.vector_store %arg6[%c0_15, %c0_16], %17 {strides = array<i32>} : memref<8x128xf32, #tpu.memory_space<vmem>>, vector<8x128xf32>,
    } else {
    }
    return
  }
  func.func @transform_0(%arg0: i32, %arg1: i32, %arg2: i32) -> (i32, i32) {
    %c0_i32 = arith.constant 0 : i32
    return %arg0, %arg2 : i32, i32
  }
  func.func @transform_1(%arg0: i32, %arg1: i32, %arg2: i32) -> (i32, i32) {
    %c0_i32 = arith.constant 0 : i32
    return %arg2, %arg1 : i32, i32
  }
  func.func @transform_2(%arg0: i32, %arg1: i32, %arg2: i32) -> (i32, i32) {
    %c0_i32 = arith.constant 0 : i32
    %c0_i32_0 = arith.constant 0 : i32
    return %c0_i32, %arg1 : i32, i32
  }
  func.func @transform_3(%arg0: i32, %arg1: i32, %arg2: i32) -> (i32, i32) {
    %c0_i32 = arith.constant 0 : i32
    return %arg0, %arg1 : i32, i32
  }
}

</mosaic_0001>

<llo_original>
// kernel: tpu_custom_call.1
$region0: #{tpu_custom_call.1}
  #allocation0 [shape = 'u32[]', space=smem, size = 0x4, offset = 0x4, fixed_abs, tag = 'smem constant byte address 0x4 - core index']
  #allocation1 [shape = 'u32[72,128]{1,0:T(1,128)}', space=vmem, size = 0x9000, scoped, tag = 'internal scratch']
  %s0 = inlined_call_operand.hbm [shape: f32[16,128], index: 0, kind: input, shape index: {}]
  %s1 = inlined_call_operand.hbm [shape: f32[128,128], index: 1, kind: input, shape index: {}]
  %s2 = inlined_call_operand.vmem [shape: f32[1,128], index: 2, kind: input, shape index: {}]
  %s3 = inlined_call_operand.hbm [shape: f32[128,128], index: 3, kind: input, shape index: {}]
  %s4 = inlined_call_operand.vmem [shape: f32[1,128], index: 4, kind: input, shape index: {}]
  %s5 = inlined_call_operand.hbm [shape: f32[128,128], index: 5, kind: input, shape index: {}]
  %s6 = inlined_call_operand.vmem [shape: f32[1,128], index: 6, kind: input, shape index: {}]
  %s7 = inlined_call_operand.hbm [shape: f32[16,128], index: 7, kind: output, shape index: {}]
  %s8 = sld [smem:[#allocation0]]
  $region77: #{tpu_custom_call.1} parent=0
    _
  %s10 = ssub.s32 1, %s8
  %s11 = scalar_select 0, %s10, %s8
  $region1: #{tpu_custom_call.1} parent=0
    #allocation2 [shape = 'u8[8192]{0}', space=vmem, size = 0x2000, scoped, tag = 'input window, operand 0']
    #allocation3 [shape = 's32[2]{0}', space=sflag, size = 0x8, scoped, tag = 'scoped memory for tpu_custom_call.1']
    #allocation4 [shape = 's32[2]{0}', space=sflag, size = 0x8, scoped, tag = 'scoped memory for tpu_custom_call.1']
    #allocation5 [shape = 'u8[65536]{0}', space=vmem, size = 0x10000, scoped, tag = 'input window, operand 1, single buffered']
    #allocation6 [shape = 's32[1]{0}', space=sflag, size = 0x4, scoped, tag = 'scoped memory for tpu_custom_call.1']
    #allocation7 [shape = 'u8[65536]{0}', space=vmem, size = 0x10000, scoped, tag = 'input window, operand 3, single buffered']
    #allocation8 [shape = 'u8[65536]{0}', space=vmem, size = 0x10000, scoped, tag = 'input window, operand 5, single buffered']
    #allocation9 [shape = 's32[1]{0}', space=sflag, size = 0x4, scoped, tag = 'scoped memory for tpu_custom_call.1']
    #allocation10 [shape = 'u8[8192]{0}', space=vmem, size = 0x2000, scoped, tag = 'output window, operand 0']
    %12 = vsyncpa [#allocation3], 0
    %s13 = scalar_lea.sflag [#allocation3], 1
    %14 = vsyncpa %s13, 0
    %15 = vsyncpa [#allocation6], 0
    %16 = vsyncpa [#allocation9], 0
    %17 = vsyncpa [#allocation4], 0
    %s18 = scalar_lea.sflag [#allocation4], 1
    %19 = vsyncpa %s18, 0
    loop: start=0, step=1, limit=4
    $region2: #{tpu_custom_call.1} parent=1 // loop_pre_header
      _
    $region3: #{tpu_custom_call.1} parent=1 // loop_header
      %s21 = sphi 0, %s25
      %p22 = scmp.ge.s32.totalorder %s21, 4
      %s31 = sphi 0, %s33
      %s34 = sphi 0, %s31
      %s35 = sphi 0, %s34
      %s51 = sphi 0, %s35
      %s55 = sphi 0, %s55
      %s57 = sphi 0, %s55
      %s58 = sphi 0, %s57
      %s72 = sphi 0, %s58
      %s76 = sphi 0, %s76
      %s78 = sphi 0, %s76
      %s79 = sphi 0, %s78
      %s93 = sphi 0, %s79
      %s97 = sphi 0, %s97
      %s99 = sphi 0, %s97
      %s100 = sphi 0, %s99
      %s114 = sphi 0, %s100
      %s118 = sphi 0, %s118
      %s120 = sphi 0, %s118
      %s121 = sphi 0, %s120
      %s135 = sphi 0, %s121
      %s139 = sphi 0, %s139
      %s141 = sphi 0, %s139
      %s142 = sphi 0, %s141
      %s156 = sphi 0, %s142
      %s160 = sphi 0, %s160
      %s162 = sphi 0, %s160
      %s163 = sphi 0, %s162
      %s177 = sphi 0, %s163
      %s183 = sphi 0, %s185
      %s186 = sphi 0, %s183
      %s187 = sphi 0, %s186
      %s203 = sphi 0, %s187
    $region4: #{tpu_custom_call.1} parent=1 // loop_header_branch
      %24 = sbr.rel (%p22) target = $region8
    $region5: #{tpu_custom_call.1} parent=1 // loop_body
      %s26 = ssub.s32 %s21, 1
      %s27 = ssub.s32 %s21, 2
      %s28 = sadd.s32 %s21, 1
      %s29 = ssub.s32 %s21, %s28
      %p30 = scmp.eq.s32.totalorder %s29, 0
      %s32 = sadd.s32 %s31, 1
      %s33 = scalar_select %p30, %s31, %s32
      %p36 = pneg %p30
      %p37 = scmp.eq.s32.totalorder %s21, 1
      %p38 = por %p36, %p37
      %p39 = scmp.ne.s32.totalorder %s31, %s34
      %p40 = scmp.eq.s32.totalorder %s21, 0
      %p41 = por %p39, %p40
      %p42 = scmp.ne.s32.totalorder %s31, %s34
      %p43 = scmp.eq.s32.totalorder %s26, 1
      %p44 = por %p42, %p43
      %p45 = scmp.ne.s32.totalorder %s34, %s35
      %p46 = scmp.eq.s32.totalorder %s26, 0
      %p47 = por %p45, %p46
      %p48 = scmp.ne.s32.totalorder %s34, %s35
      %p49 = scmp.eq.s32.totalorder %s27, 1
      %p50 = por %p48, %p49
      %p52 = scmp.ne.s32.totalorder %s35, %s51
      %p53 = scmp.eq.s32.totalorder %s27, 0
      %p54 = por %p52, %p53
      %s56 = sadd.s32 %s55, 1
      %p59 = scmp.eq.s32.totalorder %s21, 1
      %p60 = scmp.ne.s32.totalorder %s55, %s57
      %p61 = scmp.eq.s32.totalorder %s21, 0
      %p62 = por %p60, %p61
      %p63 = scmp.ne.s32.totalorder %s55, %s57
      %p64 = scmp.eq.s32.totalorder %s26, 1
      %p65 = por %p63, %p64
      %p66 = scmp.ne.s32.totalorder %s57, %s58
      %p67 = scmp.eq.s32.totalorder %s26, 0
      %p68 = por %p66, %p67
      %p69 = scmp.ne.s32.totalorder %s57, %s58
      %p70 = scmp.eq.s32.totalorder %s27, 1
      %p71 = por %p69, %p70
      %p73 = scmp.ne.s32.totalorder %s58, %s72
      %p74 = scmp.eq.s32.totalorder %s27, 0
      %p75 = por %p73, %p74
      %s77 = sadd.s32 %s76, 1
      %p80 = scmp.eq.s32.totalorder %s21, 1
      %p81 = scmp.ne.s32.totalorder %s76, %s78
      %p82 = scmp.eq.s32.totalorder %s21, 0
      %p83 = por %p81, %p82
      %p84 = scmp.ne.s32.totalorder %s76, %s78
      %p85 = scmp.eq.s32.totalorder %s26, 1
      %p86 = por %p84, %p85
      %p87 = scmp.ne.s32.totalorder %s78, %s79
      %p88 = scmp.eq.s32.totalorder %s26, 0
      %p89 = por %p87, %p88
      %p90 = scmp.ne.s32.totalorder %s78, %s79
      %p91 = scmp.eq.s32.totalorder %s27, 1
      %p92 = por %p90, %p91
      %p94 = scmp.ne.s32.totalorder %s79, %s93
      %p95 = scmp.eq.s32.totalorder %s27, 0
      %p96 = por %p94, %p95
      %s98 = sadd.s32 %s97, 1
      %p101 = scmp.eq.s32.totalorder %s21, 1
      %p102 = scmp.ne.s32.totalorder %s97, %s99
      %p103 = scmp.eq.s32.totalorder %s21, 0
      %p104 = por %p102, %p103
      %p105 = scmp.ne.s32.totalorder %s97, %s99
      %p106 = scmp.eq.s32.totalorder %s26, 1
      %p107 = por %p105, %p106
      %p108 = scmp.ne.s32.totalorder %s99, %s100
      %p109 = scmp.eq.s32.totalorder %s26, 0
      %p110 = por %p108, %p109
      %p111 = scmp.ne.s32.totalorder %s99, %s100
      %p112 = scmp.eq.s32.totalorder %s27, 1
      %p113 = por %p111, %p112
      %p115 = scmp.ne.s32.totalorder %s100, %s114
      %p116 = scmp.eq.s32.totalorder %s27, 0
      %p117 = por %p115, %p116
      %s119 = sadd.s32 %s118, 1
      %p122 = scmp.eq.s32.totalorder %s21, 1
      %p123 = scmp.ne.s32.totalorder %s118, %s120
      %p124 = scmp.eq.s32.totalorder %s21, 0
      %p125 = por %p123, %p124
      %p126 = scmp.ne.s32.totalorder %s118, %s120
      %p127 = scmp.eq.s32.totalorder %s26, 1
      %p128 = por %p126, %p127
      %p129 = scmp.ne.s32.totalorder %s120, %s121
      %p130 = scmp.eq.s32.totalorder %s26, 0
      %p131 = por %p129, %p130
      %p132 = scmp.ne.s32.totalorder %s120, %s121
      %p133 = scmp.eq.s32.totalorder %s27, 1
      %p134 = por %p132, %p133
      %p136 = scmp.ne.s32.totalorder %s121, %s135
      %p137 = scmp.eq.s32.totalorder %s27, 0
      %p138 = por %p136, %p137
      %s140 = sadd.s32 %s139, 1
      %p143 = scmp.eq.s32.totalorder %s21, 1
      %p144 = scmp.ne.s32.totalorder %s139, %s141
      %p145 = scmp.eq.s32.totalorder %s21, 0
      %p146 = por %p144, %p145
      %p147 = scmp.ne.s32.totalorder %s139, %s141
      %p148 = scmp.eq.s32.totalorder %s26, 1
      %p149 = por %p147, %p148
      %p150 = scmp.ne.s32.totalorder %s141, %s142
      %p151 = scmp.eq.s32.totalorder %s26, 0
      %p152 = por %p150, %p151
      %p153 = scmp.ne.s32.totalorder %s141, %s142
      %p154 = scmp.eq.s32.totalorder %s27, 1
      %p155 = por %p153, %p154
      %p157 = scmp.ne.s32.totalorder %s142, %s156
      %p158 = scmp.eq.s32.totalorder %s27, 0
      %p159 = por %p157, %p158
      %s161 = sadd.s32 %s160, 1
      %p164 = scmp.eq.s32.totalorder %s21, 1
      %p165 = scmp.ne.s32.totalorder %s160, %s162
      %p166 = scmp.eq.s32.totalorder %s21, 0
      %p167 = por %p165, %p166
      %p168 = scmp.ne.s32.totalorder %s160, %s162
      %p169 = scmp.eq.s32.totalorder %s26, 1
      %p170 = por %p168, %p169
      %p171 = scmp.ne.s32.totalorder %s162, %s163
      %p172 = scmp.eq.s32.totalorder %s26, 0
      %p173 = por %p171, %p172
      %p174 = scmp.ne.s32.totalorder %s162, %s163
      %p175 = scmp.eq.s32.totalorder %s27, 1
      %p176 = por %p174, %p175
      %p178 = scmp.ne.s32.totalorder %s163, %s177
      %p179 = scmp.eq.s32.totalorder %s27, 0
      %p180 = por %p178, %p179
      %s181 = ssub.s32 %s21, %s28
      %p182 = scmp.eq.s32.totalorder %s181, 0
      %s184 = sadd.s32 %s183, 1
      %s185 = scalar_select %p182, %s183, %s184
      %p188 = pneg %p182
      %p189 = scmp.eq.s32.totalorder %s21, 1
      %p190 = por %p188, %p189
      %p191 = scmp.ne.s32.totalorder %s183, %s186
      %p192 = scmp.eq.s32.totalorder %s21, 0
      %p193 = por %p191, %p192
      %p194 = scmp.ne.s32.totalorder %s183, %s186
      %p195 = scmp.eq.s32.totalorder %s26, 1
      %p196 = por %p194, %p195
      %p197 = scmp.ne.s32.totalorder %s186, %s187
      %p198 = scmp.eq.s32.totalorder %s26, 0
      %p199 = por %p197, %p198
      %p200 = scmp.ne.s32.totalorder %s186, %s187
      %p201 = scmp.eq.s32.totalorder %s27, 1
      %p202 = por %p200, %p201
      %p204 = scmp.ne.s32.totalorder %s187, %s203
      %p205 = scmp.eq.s32.totalorder %s27, 0
      %p206 = por %p204, %p205
      %p207 = scmp.le.s32.totalorder 1, %s21
      %p208 = scmp.lt.s32.totalorder %s21, 3
      %p209 = pnand %p207, %p208
      %p210 = pneg %p209
      // Predicated region
      $region9: #{tpu_custom_call.1} parent=5 // pred_check
        _
      $region10: #{tpu_custom_call.1} parent=5 // pred_check_branch
        %212 = sbr.rel (%p209) target = $region12
      $region11: #{tpu_custom_call.1} parent=5 // pred_region
        %s213 = ssub.s32 %s21, 1
        // Predicated region
        $region13: #{tpu_custom_call.1} parent=11 // pred_check
          %p214 = pneg %p68
        $region14: #{tpu_custom_call.1} parent=11 // pred_check_branch
          %216 = sbr.rel (%p214) target = $region16
        $region15: #{tpu_custom_call.1} parent=11 // pred_region
          %218 = vsyncadd [#allocation6], 0
          %s219 = sshll.u32 %s1, 4
          %s220 = int_to_ptr.hbm [resolvable:$true] %s219
          %s221 = sshll.u32 [#allocation5], 4
          %s222 = int_to_ptr.vmem [resolvable:$true] %s221
          %227 = dma.hbm_to_vmem [thread:$0]  %s220, 2048, %s222, [#allocation6], 128, 128, 8
        $region16: #{tpu_custom_call.1} parent=11 // pred_fallthru
          _
        // Predicated region
        $region17: #{tpu_custom_call.1} parent=11 // pred_check
          %p228 = pneg %p89
        $region18: #{tpu_custom_call.1} parent=11 // pred_check_branch
          %230 = sbr.rel (%p228) target = $region20
        $region19: #{tpu_custom_call.1} parent=11 // pred_region
          _
        $region20: #{tpu_custom_call.1} parent=11 // pred_fallthru
          _
        // Predicated region
        $region21: #{tpu_custom_call.1} parent=11 // pred_check
          %p231 = pneg %p110
        $region22: #{tpu_custom_call.1} parent=11 // pred_check_branch
          %233 = sbr.rel (%p231) target = $region24
        $region23: #{tpu_custom_call.1} parent=11 // pred_region
          %235 = vsyncadd [#allocation6], 0
          %s236 = sshll.u32 %s3, 4
          %s237 = int_to_ptr.hbm [resolvable:$true] %s236
          %s238 = sshll.u32 [#allocation7], 4
          %s239 = int_to_ptr.vmem [resolvable:$true] %s238
          %244 = dma.hbm_to_vmem [thread:$0]  %s237, 2048, %s239, [#allocation6], 128, 128, 8
        $region24: #{tpu_custom_call.1} parent=11 // pred_fallthru
          _
        // Predicated region
        $region25: #{tpu_custom_call.1} parent=11 // pred_check
          %p245 = pneg %p131
        $region26: #{tpu_custom_call.1} parent=11 // pred_check_branch
          %247 = sbr.rel (%p245) target = $region28
        $region27: #{tpu_custom_call.1} parent=11 // pred_region
          _
        $region28: #{tpu_custom_call.1} parent=11 // pred_fallthru
          _
        // Predicated region
        $region29: #{tpu_custom_call.1} parent=11 // pred_check
          %p248 = pneg %p152
        $region30: #{tpu_custom_call.1} parent=11 // pred_check_branch
          %250 = sbr.rel (%p248) target = $region32
        $region31: #{tpu_custom_call.1} parent=11 // pred_region
          %252 = vsyncadd [#allocation9], 0
          %s253 = sshll.u32 %s5, 4
          %s254 = int_to_ptr.hbm [resolvable:$true] %s253
          %s255 = sshll.u32 [#allocation8], 4
          %s256 = int_to_ptr.vmem [resolvable:$true] %s255
          %261 = dma.hbm_to_vmem [thread:$0]  %s254, 2048, %s256, [#allocation9], 128, 128, 8
        $region32: #{tpu_custom_call.1} parent=11 // pred_fallthru
          _
        // Predicated region
        $region33: #{tpu_custom_call.1} parent=11 // pred_check
          %p262 = pneg %p173
        $region34: #{tpu_custom_call.1} parent=11 // pred_check_branch
          %264 = sbr.rel (%p262) target = $region36
        $region35: #{tpu_custom_call.1} parent=11 // pred_region
          _
        $region36: #{tpu_custom_call.1} parent=11 // pred_fallthru
          _
      $region12: #{tpu_custom_call.1} parent=5 // pred_fallthru
        _
      %p265 = scmp.lt.s32.totalorder %s21, 2
      // Predicated region
      $region37: #{tpu_custom_call.1} parent=5 // pred_check
        %p266 = pneg %p265
      $region38: #{tpu_custom_call.1} parent=5 // pred_check_branch
        %268 = sbr.rel (%p266) target = $region40
      $region39: #{tpu_custom_call.1} parent=5 // pred_region
        // Predicated region
        $region41: #{tpu_custom_call.1} parent=39 // pred_check
          %p269 = pneg %p41
        $region42: #{tpu_custom_call.1} parent=39 // pred_check_branch
          %271 = sbr.rel (%p269) target = $region44
        $region43: #{tpu_custom_call.1} parent=39 // pred_region
          %s272 = sand.u32 %s31, 1
          %s273 = scalar_lea.sflag [#allocation3], %s272
          %s274 = sand.u32 %s31, 1
          %s275 = smul.addr %s274, 8
          %s276 = scalar_lea.vmem [#allocation2], %s275
          %278 = vsyncadd %s273, 0
          %s279 = smul.addr %s21, 8
          %s280 = scalar_lea.hbm %s0, %s279
          %s282 = sshll.u32 %s280, 4
          %s283 = int_to_ptr.hbm [resolvable:$true] %s282
          %s284 = sshll.u32 %s276, 4
          %s285 = int_to_ptr.vmem [resolvable:$true] %s284
          %287 = dma.hbm_to_vmem [thread:$0]  %s283, 128, %s285, %s273
        $region44: #{tpu_custom_call.1} parent=39 // pred_fallthru
          _
      $region40: #{tpu_custom_call.1} parent=5 // pred_fallthru
        _
      %p288 = scmp.le.s32.totalorder 1, %s21
      %p289 = scmp.lt.s32.totalorder %s21, 3
      %p290 = pnand %p288, %p289
      %p291 = pneg %p290
      // Predicated region
      $region45: #{tpu_custom_call.1} parent=5 // pred_check
        _
      $region46: #{tpu_custom_call.1} parent=5 // pred_check_branch
        %293 = sbr.rel (%p290) target = $region48
      $region47: #{tpu_custom_call.1} parent=5 // pred_region
        %s294 = ssub.s32 %s21, 1
        %s295 = sand.u32 %s34, 1
        %s296 = scalar_lea.sflag [#allocation3], %s295
        %s297 = sand.u32 %s34, 1
        %s298 = smul.addr %s297, 8
        %s299 = scalar_lea.vmem [#allocation2], %s298
        // Predicated region
        $region49: #{tpu_custom_call.1} parent=47 // pred_check
          %p300 = pneg %p47
        $region50: #{tpu_custom_call.1} parent=47 // pred_check_branch
          %302 = sbr.rel (%p300) target = $region52
        $region51: #{tpu_custom_call.1} parent=47 // pred_region
          %304 = dma.done %s296, 128
        $region52: #{tpu_custom_call.1} parent=47 // pred_fallthru
          _
        // Predicated region
        $region53: #{tpu_custom_call.1} parent=47 // pred_check
          %p305 = pneg %p68
        $region54: #{tpu_custom_call.1} parent=47 // pred_check_branch
          %307 = sbr.rel (%p305) target = $region56
        $region55: #{tpu_custom_call.1} parent=47 // pred_region
          %309 = dma.done [#allocation6], 2048
        $region56: #{tpu_custom_call.1} parent=47 // pred_fallthru
          _
        // Predicated region
        $region57: #{tpu_custom_call.1} parent=47 // pred_check
          %p310 = pneg %p110
        $region58: #{tpu_custom_call.1} parent=47 // pred_check_branch
          %312 = sbr.rel (%p310) target = $region60
        $region59: #{tpu_custom_call.1} parent=47 // pred_region
          %314 = dma.done [#allocation6], 2048
        $region60: #{tpu_custom_call.1} parent=47 // pred_fallthru
          _
        // Predicated region
        $region61: #{tpu_custom_call.1} parent=47 // pred_check
          %p315 = pneg %p152
        $region62: #{tpu_custom_call.1} parent=47 // pred_check_branch
          %317 = sbr.rel (%p315) target = $region64
        $region63: #{tpu_custom_call.1} parent=47 // pred_region
          %319 = dma.done [#allocation9], 2048
        $region64: #{tpu_custom_call.1} parent=47 // pred_fallthru
          _
        %s320 = sand.u32 %s34, 1
        %s321 = scalar_lea.sflag [#allocation3], %s320
        %s322 = sand.u32 %s34, 1
        %s323 = smul.addr %s322, 8
        %s324 = scalar_lea.vmem [#allocation2], %s323
        %p325 = pneg %p47
        %p326 = pneg %p44
        %p327 = pneg %p68
        %p328 = pneg %p65
        %p329 = pneg %p89
        %p330 = pneg %p86
        %p331 = pneg %p110
        %p332 = pneg %p107
        %p333 = pneg %p131
        %p334 = pneg %p128
        %p335 = pneg %p152
        %p336 = pneg %p149
        %p337 = pneg %p173
        %p338 = pneg %p170
        %p339 = pneg %p199
        %p340 = pneg %p196
        %s341 = sand.u32 %s186, 1
        %s342 = scalar_lea.sflag [#allocation4], %s341
        %s343 = sand.u32 %s186, 1
        %s344 = smul.addr %s343, 8
        %s345 = scalar_lea.vmem [#allocation10], %s344
        %v346 = vld [vmem:[%s299] sm:$0xff]
        %v347 = vld [vmem:[#allocation5] sm:$0xff]
        %v348 = vld [vmem:[#allocation5 + $0x8] sm:$0xff]
        %v349 = vld [vmem:[#allocation5 + $0x10] sm:$0xff]
        %v350 = vld [vmem:[#allocation5 + $0x18] sm:$0xff]
        %v351 = vld [vmem:[#allocation5 + $0x20] sm:$0xff]
        %v352 = vld [vmem:[#allocation5 + $0x28] sm:$0xff]
        %v353 = vld [vmem:[#allocation5 + $0x30] sm:$0xff]
        %v354 = vld [vmem:[#allocation5 + $0x38] sm:$0xff]
        %v355 = vld [vmem:[#allocation5 + $0x40] sm:$0xff]
        %v356 = vld [vmem:[#allocation5 + $0x48] sm:$0xff]
        %v357 = vld [vmem:[#allocation5 + $0x50] sm:$0xff]
        %v358 = vld [vmem:[#allocation5 + $0x58] sm:$0xff]
        %v359 = vld [vmem:[#allocation5 + $0x60] sm:$0xff]
        %v360 = vld [vmem:[#allocation5 + $0x68] sm:$0xff]
        %v361 = vld [vmem:[#allocation5 + $0x70] sm:$0xff]
        %v362 = vld [vmem:[#allocation5 + $0x78] sm:$0xff]
        %v363 = vld [vmem:[%s2] sm:$0x1]
        %v365 = vperm.slane %v363, 0
        %367 = vmatpush.msra.mxu0 %v362
        %368 = vmatpush.msra.mxu0 %v361
        %369 = vmatpush.msra.mxu0 %v360
        %370 = vmatpush.msra.mxu0 %v359
        %371 = vmatpush.msra.mxu0 %v358
        %372 = vmatpush.msra.mxu0 %v357
        %373 = vmatpush.msra.mxu0 %v356
        %374 = vmatpush.msra.mxu0 %v355
        %375 = vmatpush.msra.mxu0 %v354
        %376 = vmatpush.msra.mxu0 %v353
        %377 = vmatpush.msra.mxu0 %v352
        %378 = vmatpush.msra.mxu0 %v351
        %379 = vmatpush.msra.mxu0 %v350
        %380 = vmatpush.msra.mxu0 %v349
        %381 = vmatpush.msra.mxu0 %v348
        %382 = vmatpush.msra.mxu0 %v347
        %383 = vmatmul.f32.gmra.mxu0 %v346
        %v384 = vpop.f32.mrf.mxu0
        %v385 = vadd.f32 %v365, %v384
        %386 = vdwg.mxu0
        %v387 = vmax.f32 %v385, 0.0
        %v388 = vld [vmem:[#allocation7] sm:$0xff]
        %v389 = vld [vmem:[#allocation7 + $0x8] sm:$0xff]
        %v390 = vld [vmem:[#allocation7 + $0x10] sm:$0xff]
        %v391 = vld [vmem:[#allocation7 + $0x18] sm:$0xff]
        %v392 = vld [vmem:[#allocation7 + $0x20] sm:$0xff]
        %v393 = vld [vmem:[#allocation7 + $0x28] sm:$0xff]
        %v394 = vld [vmem:[#allocation7 + $0x30] sm:$0xff]
        %v395 = vld [vmem:[#allocation7 + $0x38] sm:$0xff]
        %v396 = vld [vmem:[#allocation7 + $0x40] sm:$0xff]
        %v397 = vld [vmem:[#allocation7 + $0x48] sm:$0xff]
        %v398 = vld [vmem:[#allocation7 + $0x50] sm:$0xff]
        %v399 = vld [vmem:[#allocation7 + $0x58] sm:$0xff]
        %v400 = vld [vmem:[#allocation7 + $0x60] sm:$0xff]
        %v401 = vld [vmem:[#allocation7 + $0x68] sm:$0xff]
        %v402 = vld [vmem:[#allocation7 + $0x70] sm:$0xff]
        %v403 = vld [vmem:[#allocation7 + $0x78] sm:$0xff]
        %v404 = vld [vmem:[%s4] sm:$0x1]
        %v406 = vperm.slane %v404, 0
        %408 = vmatpush.msra.mxu0 %v403
        %409 = vmatpush.msra.mxu0 %v402
        %410 = vmatpush.msra.mxu0 %v401
        %411 = vmatpush.msra.mxu0 %v400
        %412 = vmatpush.msra.mxu0 %v399
        %413 = vmatpush.msra.mxu0 %v398
        %414 = vmatpush.msra.mxu0 %v397
        %415 = vmatpush.msra.mxu0 %v396
        %416 = vmatpush.msra.mxu0 %v395
        %417 = vmatpush.msra.mxu0 %v394
        %418 = vmatpush.msra.mxu0 %v393
        %419 = vmatpush.msra.mxu0 %v392
        %420 = vmatpush.msra.mxu0 %v391
        %421 = vmatpush.msra.mxu0 %v390
        %422 = vmatpush.msra.mxu0 %v389
        %423 = vmatpush.msra.mxu0 %v388
        %424 = vmatmul.f32.gmra.mxu0 %v387
        %v425 = vpop.f32.mrf.mxu0
        %v426 = vadd.f32 %v406, %v425
        %427 = vdwg.mxu0
        %v428 = vmax.f32 %v426, 0.0
        %v429 = vld [vmem:[#allocation8] sm:$0xff]
        %v430 = vld [vmem:[#allocation8 + $0x8] sm:$0xff]
        %v431 = vld [vmem:[#allocation8 + $0x10] sm:$0xff]
        %v432 = vld [vmem:[#allocation8 + $0x18] sm:$0xff]
        %v433 = vld [vmem:[#allocation8 + $0x20] sm:$0xff]
        %v434 = vld [vmem:[#allocation8 + $0x28] sm:$0xff]
        %v435 = vld [vmem:[#allocation8 + $0x30] sm:$0xff]
        %v436 = vld [vmem:[#allocation8 + $0x38] sm:$0xff]
        %v437 = vld [vmem:[#allocation8 + $0x40] sm:$0xff]
        %v438 = vld [vmem:[#allocation8 + $0x48] sm:$0xff]
        %v439 = vld [vmem:[#allocation8 + $0x50] sm:$0xff]
        %v440 = vld [vmem:[#allocation8 + $0x58] sm:$0xff]
        %v441 = vld [vmem:[#allocation8 + $0x60] sm:$0xff]
        %v442 = vld [vmem:[#allocation8 + $0x68] sm:$0xff]
        %v443 = vld [vmem:[#allocation8 + $0x70] sm:$0xff]
        %v444 = vld [vmem:[#allocation8 + $0x78] sm:$0xff]
        %v445 = vld [vmem:[%s6] sm:$0x1]
        %v447 = vperm.slane %v445, 0
        %449 = vmatpush.msra.mxu0 %v444
        %450 = vmatpush.msra.mxu0 %v443
        %451 = vmatpush.msra.mxu0 %v442
        %452 = vmatpush.msra.mxu0 %v441
        %453 = vmatpush.msra.mxu0 %v440
        %454 = vmatpush.msra.mxu0 %v439
        %455 = vmatpush.msra.mxu0 %v438
        %456 = vmatpush.msra.mxu0 %v437
        %457 = vmatpush.msra.mxu0 %v436
        %458 = vmatpush.msra.mxu0 %v435
        %459 = vmatpush.msra.mxu0 %v434
        %460 = vmatpush.msra.mxu0 %v433
        %461 = vmatpush.msra.mxu0 %v432
        %462 = vmatpush.msra.mxu0 %v431
        %463 = vmatpush.msra.mxu0 %v430
        %464 = vmatpush.msra.mxu0 %v429
        %465 = vmatmul.f32.gmra.mxu0 %v428
        %v466 = vpop.f32.mrf.mxu0
        %v467 = vadd.f32 %v447, %v466
        %468 = vdwg.mxu0
        %469 = vst [vmem:[%s345] sm:$0xff] %v467
        %s470 = sand.u32 %s186, 1
        %s471 = scalar_lea.sflag [#allocation4], %s470
        %s472 = sand.u32 %s186, 1
        %s473 = smul.addr %s472, 8
        %s474 = scalar_lea.vmem [#allocation10], %s473
        // Predicated region
        $region65: #{tpu_custom_call.1} parent=47 // pred_check
          %p475 = pneg %p196
        $region66: #{tpu_custom_call.1} parent=47 // pred_check_branch
          %477 = sbr.rel (%p475) target = $region68
        $region67: #{tpu_custom_call.1} parent=47 // pred_region
          %479 = vsyncadd %s471, 0
          %s480 = smul.addr %s26, 8
          %s481 = scalar_lea.hbm %s7, %s480
          %s483 = sshll.u32 %s474, 4
          %s484 = int_to_ptr.vmem [resolvable:$true] %s483
          %s485 = sshll.u32 %s481, 4
          %s486 = int_to_ptr.hbm [resolvable:$true] %s485
          %488 = dma.vmem_to_hbm [thread:$0]  %s484, 128, %s486, %s471
        $region68: #{tpu_custom_call.1} parent=47 // pred_fallthru
          _
      $region48: #{tpu_custom_call.1} parent=5 // pred_fallthru
        _
      %p489 = scmp.le.s32.totalorder 2, %s21
      // Predicated region
      $region69: #{tpu_custom_call.1} parent=5 // pred_check
        %p490 = pneg %p489
      $region70: #{tpu_custom_call.1} parent=5 // pred_check_branch
        %492 = sbr.rel (%p490) target = $region72
      $region71: #{tpu_custom_call.1} parent=5 // pred_region
        %s493 = ssub.s32 %s21, 2
        // Predicated region
        $region73: #{tpu_custom_call.1} parent=71 // pred_check
          %p494 = pneg %p202
        $region74: #{tpu_custom_call.1} parent=71 // pred_check_branch
          %496 = sbr.rel (%p494) target = $region76
        $region75: #{tpu_custom_call.1} parent=71 // pred_region
          %s497 = sand.u32 %s187, 1
          %s498 = scalar_lea.sflag [#allocation4], %s497
          %s499 = sand.u32 %s187, 1
          %s500 = smul.addr %s499, 8
          %s501 = scalar_lea.vmem [#allocation10], %s500
          %503 = dma.done %s498, 128
        $region76: #{tpu_custom_call.1} parent=71 // pred_fallthru
          _
      $region72: #{tpu_custom_call.1} parent=5 // pred_fallthru
        _
    $region6: #{tpu_custom_call.1} parent=1 // loop_footer
      %s25 = sadd.s32 1, %s21
    $region7: #{tpu_custom_call.1} parent=1 // loop_footer_branch
      %20 = sbr.rel target = $region3
    $region8: #{tpu_custom_call.1} parent=1 // loop_exit
      _
    %504 = vsyncpa [#allocation3], 1
    %s505 = scalar_lea.sflag [#allocation3], 1
    %506 = vsyncpa %s505, 1
    %507 = vsyncpa [#allocation6], 1
    %508 = vsyncpa [#allocation9], 1
    %509 = vsyncpa [#allocation4], 1
    %s510 = scalar_lea.sflag [#allocation4], 1
    %511 = vsyncpa %s510, 1

// kernel: tpu_custom_call.1
$region0: #{tpu_custom_call.1}
  #allocation0 [shape = 'u32[]', space=smem, size = 0x4, offset = 0x4, fixed_abs, tag = 'smem constant byte address 0x4 - core index']
  #allocation1 [shape = 'u32[72,128]{1,0:T(1,128)}', space=vmem, size = 0x9000, scoped, tag = 'internal scratch']
  %s0 = inlined_call_operand.hbm [shape: f32[16,128], index: 0, kind: input, shape index: {}]
  %s1 = inlined_call_operand.hbm [shape: f32[128,128], index: 1, kind: input, shape index: {}]
  %s2 = inlined_call_operand.vmem [shape: f32[1,128], index: 2, kind: input, shape index: {}]
  %s3 = inlined_call_operand.hbm [shape: f32[16,128], index: 3, kind: output, shape index: {}]
  %s4 = sld [smem:[#allocation0]]
  $region61: #{tpu_custom_call.1} parent=0
    _
  %s6 = ssub.s32 1, %s4
  %s7 = scalar_select 0, %s6, %s4
  $region1: #{tpu_custom_call.1} parent=0
    #allocation2 [shape = 'u8[8192]{0}', space=vmem, size = 0x2000, scoped, tag = 'input window, operand 0']
    #allocation3 [shape = 's32[2]{0}', space=sflag, size = 0x8, scoped, tag = 'scoped memory for tpu_custom_call.1']
    #allocation4 [shape = 's32[2]{0}', space=sflag, size = 0x8, scoped, tag = 'scoped memory for tpu_custom_call.1']
    #allocation5 [shape = 'u8[65536]{0}', space=vmem, size = 0x10000, scoped, tag = 'input window, operand 1, single buffered']
    #allocation6 [shape = 's32[1]{0}', space=sflag, size = 0x4, scoped, tag = 'scoped memory for tpu_custom_call.1']
    #allocation7 [shape = 'u8[8192]{0}', space=vmem, size = 0x2000, scoped, tag = 'output window, operand 0']
    %8 = vsyncpa [#allocation3], 0
    %s9 = scalar_lea.sflag [#allocation3], 1
    %10 = vsyncpa %s9, 0
    %11 = vsyncpa [#allocation6], 0
    %12 = vsyncpa [#allocation4], 0
    %s13 = scalar_lea.sflag [#allocation4], 1
    %14 = vsyncpa %s13, 0
    loop: start=0, step=1, limit=4
    $region2: #{tpu_custom_call.1} parent=1 // loop_pre_header
      _
    $region3: #{tpu_custom_call.1} parent=1 // loop_header
      %s16 = sphi 0, %s20
      %p17 = scmp.ge.s32.totalorder %s16, 4
      %s23 = sphi 0, %s42
      %s24 = sphi 0, %s38
      %s25 = sphi 0, %s34
      %s26 = sphi 0, %s23
      %s27 = sphi 0, %s24
      %s28 = sphi 0, %s25
      %s29 = sphi 0, %s26
      %s30 = sphi 0, %s27
      %s31 = sphi 0, %s28
      %s47 = sphi 0, %s49
      %s50 = sphi 0, %s47
      %s51 = sphi 0, %s50
      %s67 = sphi 0, %s51
      %s75 = sphi 0, %s77
      %s78 = sphi 0, %s75
      %s79 = sphi 0, %s78
      %s95 = sphi 0, %s79
      %s101 = sphi 0, %s103
      %s104 = sphi 0, %s101
      %s105 = sphi 0, %s104
      %s121 = sphi 0, %s105
      %s129 = sphi 0, %s131
      %s132 = sphi 0, %s129
      %s133 = sphi 0, %s132
      %s149 = sphi 0, %s133
    $region4: #{tpu_custom_call.1} parent=1 // loop_header_branch
      %19 = sbr.rel (%p17) target = $region8
    $region5: #{tpu_custom_call.1} parent=1 // loop_body
      %s21 = ssub.s32 %s16, 1
      %s22 = ssub.s32 %s16, 2
      %s32 = sadd.s32 1, %s25
      %p33 = scmp.ge.s32.totalorder %s32, 1
      %s34 = scalar_select %p33, 0, %s32
      %s35 = sadd.s32 1, %s24
      %s36 = scalar_select %p33, %s35, %s24
      %p37 = scmp.ge.s32.totalorder %s36, 1
      %s38 = scalar_select %p37, 0, %s36
      %s39 = sadd.s32 1, %s23
      %s40 = scalar_select %p37, %s39, %s23
      %p41 = scmp.ge.s32.totalorder %s40, 2
      %s42 = scalar_select %p41, 0, %s40
      %s43 = ssub.s32 %s23, %s42
      %s44 = ssub.s32 %s25, %s34
      %s45 = sor.u32 %s43, %s44
      %p46 = scmp.eq.s32.totalorder %s45, 0
      %s48 = sadd.s32 %s47, 1
      %s49 = scalar_select %p46, %s47, %s48
      %p52 = pneg %p46
      %p53 = scmp.eq.s32.totalorder %s16, 1
      %p54 = por %p52, %p53
      %p55 = scmp.ne.s32.totalorder %s47, %s50
      %p56 = scmp.eq.s32.totalorder %s16, 0
      %p57 = por %p55, %p56
      %p58 = scmp.ne.s32.totalorder %s47, %s50
      %p59 = scmp.eq.s32.totalorder %s21, 1
      %p60 = por %p58, %p59
      %p61 = scmp.ne.s32.totalorder %s50, %s51
      %p62 = scmp.eq.s32.totalorder %s21, 0
      %p63 = por %p61, %p62
      %p64 = scmp.ne.s32.totalorder %s50, %s51
      %p65 = scmp.eq.s32.totalorder %s22, 1
      %p66 = por %p64, %p65
      %p68 = scmp.ne.s32.totalorder %s51, %s67
      %p69 = scmp.eq.s32.totalorder %s22, 0
      %p70 = por %p68, %p69
      %s71 = ssub.s32 %s25, %s34
      %s72 = ssub.s32 %s24, %s38
      %s73 = sor.u32 %s71, %s72
      %p74 = scmp.eq.s32.totalorder %s73, 0
      %s76 = sadd.s32 %s75, 1
      %s77 = scalar_select %p74, %s75, %s76
      %p80 = pneg %p74
      %p81 = scmp.eq.s32.totalorder %s16, 1
      %p82 = por %p80, %p81
      %p83 = scmp.ne.s32.totalorder %s75, %s78
      %p84 = scmp.eq.s32.totalorder %s16, 0
      %p85 = por %p83, %p84
      %p86 = scmp.ne.s32.totalorder %s75, %s78
      %p87 = scmp.eq.s32.totalorder %s21, 1
      %p88 = por %p86, %p87
      %p89 = scmp.ne.s32.totalorder %s78, %s79
      %p90 = scmp.eq.s32.totalorder %s21, 0
      %p91 = por %p89, %p90
      %p92 = scmp.ne.s32.totalorder %s78, %s79
      %p93 = scmp.eq.s32.totalorder %s22, 1
      %p94 = por %p92, %p93
      %p96 = scmp.ne.s32.totalorder %s79, %s95
      %p97 = scmp.eq.s32.totalorder %s22, 0
      %p98 = por %p96, %p97
      %s99 = ssub.s32 %s24, %s38
      %p100 = scmp.eq.s32.totalorder %s99, 0
      %s102 = sadd.s32 %s101, 1
      %s103 = scalar_select %p100, %s101, %s102
      %p106 = pneg %p100
      %p107 = scmp.eq.s32.totalorder %s16, 1
      %p108 = por %p106, %p107
      %p109 = scmp.ne.s32.totalorder %s101, %s104
      %p110 = scmp.eq.s32.totalorder %s16, 0
      %p111 = por %p109, %p110
      %p112 = scmp.ne.s32.totalorder %s101, %s104
      %p113 = scmp.eq.s32.totalorder %s21, 1
      %p114 = por %p112, %p113
      %p115 = scmp.ne.s32.totalorder %s104, %s105
      %p116 = scmp.eq.s32.totalorder %s21, 0
      %p117 = por %p115, %p116
      %p118 = scmp.ne.s32.totalorder %s104, %s105
      %p119 = scmp.eq.s32.totalorder %s22, 1
      %p120 = por %p118, %p119
      %p122 = scmp.ne.s32.totalorder %s105, %s121
      %p123 = scmp.eq.s32.totalorder %s22, 0
      %p124 = por %p122, %p123
      %s125 = ssub.s32 %s23, %s42
      %s126 = ssub.s32 %s24, %s38
      %s127 = sor.u32 %s125, %s126
      %p128 = scmp.eq.s32.totalorder %s127, 0
      %s130 = sadd.s32 %s129, 1
      %s131 = scalar_select %p128, %s129, %s130
      %p134 = pneg %p128
      %p135 = scmp.eq.s32.totalorder %s16, 1
      %p136 = por %p134, %p135
      %p137 = scmp.ne.s32.totalorder %s129, %s132
      %p138 = scmp.eq.s32.totalorder %s16, 0
      %p139 = por %p137, %p138
      %p140 = scmp.ne.s32.totalorder %s129, %s132
      %p141 = scmp.eq.s32.totalorder %s21, 1
      %p142 = por %p140, %p141
      %p143 = scmp.ne.s32.totalorder %s132, %s133
      %p144 = scmp.eq.s32.totalorder %s21, 0
      %p145 = por %p143, %p144
      %p146 = scmp.ne.s32.totalorder %s132, %s133
      %p147 = scmp.eq.s32.totalorder %s22, 1
      %p148 = por %p146, %p147
      %p150 = scmp.ne.s32.totalorder %s133, %s149
      %p151 = scmp.eq.s32.totalorder %s22, 0
      %p152 = por %p150, %p151
      %p153 = scmp.le.s32.totalorder 1, %s16
      %p154 = scmp.lt.s32.totalorder %s16, 3
      %p155 = pnand %p153, %p154
      %p156 = pneg %p155
      // Predicated region
      $region9: #{tpu_custom_call.1} parent=5 // pred_check
        _
      $region10: #{tpu_custom_call.1} parent=5 // pred_check_branch
        %158 = sbr.rel (%p155) target = $region12
      $region11: #{tpu_custom_call.1} parent=5 // pred_region
        %s159 = ssub.s32 %s16, 1
        // Predicated region
        $region13: #{tpu_custom_call.1} parent=11 // pred_check
          %p160 = pneg %p91
        $region14: #{tpu_custom_call.1} parent=11 // pred_check_branch
          %162 = sbr.rel (%p160) target = $region16
        $region15: #{tpu_custom_call.1} parent=11 // pred_region
          %s163 = smul.u32 16, %s28
          %165 = vsyncadd [#allocation6], 0
          %s166 = sadd.s32 %s27, %s163
          %s167 = smul.addr %s166, 8
          %s168 = scalar_lea.hbm %s1, %s167
          %s169 = sshll.u32 %s168, 4
          %s170 = int_to_ptr.hbm [resolvable:$true] %s169
          %s171 = sshll.u32 [#allocation5], 4
          %s172 = int_to_ptr.vmem [resolvable:$true] %s171
          %177 = dma.hbm_to_vmem [thread:$0]  %s170, 2048, %s172, [#allocation6], 128, 128, 8
        $region16: #{tpu_custom_call.1} parent=11 // pred_fallthru
          _
        // Predicated region
        $region17: #{tpu_custom_call.1} parent=11 // pred_check
          %p178 = pneg %p117
        $region18: #{tpu_custom_call.1} parent=11 // pred_check_branch
          %180 = sbr.rel (%p178) target = $region20
        $region19: #{tpu_custom_call.1} parent=11 // pred_region
          %p181 = scmp.lt.s32.totalorder %s27, 0
          %s182 = scalar_select %p181, %s27, 0
          %s183 = scalar_lea.vmem %s2, %s182
        $region20: #{tpu_custom_call.1} parent=11 // pred_fallthru
          _
      $region12: #{tpu_custom_call.1} parent=5 // pred_fallthru
        _
      %p184 = scmp.lt.s32.totalorder %s16, 2
      // Predicated region
      $region21: #{tpu_custom_call.1} parent=5 // pred_check
        %p185 = pneg %p184
      $region22: #{tpu_custom_call.1} parent=5 // pred_check_branch
        %187 = sbr.rel (%p185) target = $region24
      $region23: #{tpu_custom_call.1} parent=5 // pred_region
        // Predicated region
        $region25: #{tpu_custom_call.1} parent=23 // pred_check
          %p188 = pneg %p57
        $region26: #{tpu_custom_call.1} parent=23 // pred_check_branch
          %190 = sbr.rel (%p188) target = $region28
        $region27: #{tpu_custom_call.1} parent=23 // pred_region
          %s191 = sand.u32 %s47, 1
          %s192 = scalar_lea.sflag [#allocation3], %s191
          %s193 = sand.u32 %s47, 1
          %s194 = smul.addr %s193, 8
          %s195 = scalar_lea.vmem [#allocation2], %s194
          %197 = vsyncadd %s192, 0
          %s198 = sadd.s32 %s25, %s23
          %s199 = smul.addr %s198, 8
          %s200 = scalar_lea.hbm %s0, %s199
          %s202 = sshll.u32 %s200, 4
          %s203 = int_to_ptr.hbm [resolvable:$true] %s202
          %s204 = sshll.u32 %s195, 4
          %s205 = int_to_ptr.vmem [resolvable:$true] %s204
          %207 = dma.hbm_to_vmem [thread:$0]  %s203, 128, %s205, %s192
        $region28: #{tpu_custom_call.1} parent=23 // pred_fallthru
          _
      $region24: #{tpu_custom_call.1} parent=5 // pred_fallthru
        _
      %p208 = scmp.le.s32.totalorder 1, %s16
      %p209 = scmp.lt.s32.totalorder %s16, 3
      %p210 = pnand %p208, %p209
      %p211 = pneg %p210
      // Predicated region
      $region29: #{tpu_custom_call.1} parent=5 // pred_check
        _
      $region30: #{tpu_custom_call.1} parent=5 // pred_check_branch
        %213 = sbr.rel (%p210) target = $region32
      $region31: #{tpu_custom_call.1} parent=5 // pred_region
        %s214 = ssub.s32 %s16, 1
        %s215 = sand.u32 %s50, 1
        %s216 = scalar_lea.sflag [#allocation3], %s215
        %s217 = sand.u32 %s50, 1
        %s218 = smul.addr %s217, 8
        %s219 = scalar_lea.vmem [#allocation2], %s218
        // Predicated region
        $region33: #{tpu_custom_call.1} parent=31 // pred_check
          %p220 = pneg %p63
        $region34: #{tpu_custom_call.1} parent=31 // pred_check_branch
          %222 = sbr.rel (%p220) target = $region36
        $region35: #{tpu_custom_call.1} parent=31 // pred_region
          %224 = dma.done %s216, 128
        $region36: #{tpu_custom_call.1} parent=31 // pred_fallthru
          _
        // Predicated region
        $region37: #{tpu_custom_call.1} parent=31 // pred_check
          %p225 = pneg %p91
        $region38: #{tpu_custom_call.1} parent=31 // pred_check_branch
          %227 = sbr.rel (%p225) target = $region40
        $region39: #{tpu_custom_call.1} parent=31 // pred_region
          %229 = dma.done [#allocation6], 2048
        $region40: #{tpu_custom_call.1} parent=31 // pred_fallthru
          _
        %s230 = sand.u32 %s50, 1
        %s231 = scalar_lea.sflag [#allocation3], %s230
        %s232 = sand.u32 %s50, 1
        %s233 = smul.addr %s232, 8
        %s234 = scalar_lea.vmem [#allocation2], %s233
        %p235 = pneg %p63
        %p236 = pneg %p60
        %p237 = pneg %p91
        %p238 = pneg %p88
        %p239 = scmp.lt.s32.totalorder %s27, 0
        %s240 = scalar_select %p239, %s27, 0
        %s241 = scalar_lea.vmem %s2, %s240
        %p242 = pneg %p117
        %p243 = pneg %p114
        %p244 = pneg %p145
        %p245 = pneg %p142
        %s246 = sand.u32 %s132, 1
        %s247 = scalar_lea.sflag [#allocation4], %s246
        %s248 = sand.u32 %s132, 1
        %s249 = smul.addr %s248, 8
        %s250 = scalar_lea.vmem [#allocation7], %s249
        %s251 = smul.u32 16, %s28
        %p252 = scmp.lt.s32.totalorder %s27, 0
        %s253 = scalar_select %p252, %s27, 0
        %s254 = scalar_lea.vmem %s2, %s253
        %p255 = scmp.eq.s32.totalorder %s28, 0
        // Predicated region
        $region41: #{tpu_custom_call.1} parent=31 // pred_check
          %p256 = pneg %p255
        $region42: #{tpu_custom_call.1} parent=31 // pred_check_branch
          %258 = sbr.rel (%p256) target = $region44
        $region43: #{tpu_custom_call.1} parent=31 // pred_region
          %259 = vst [vmem:[%s250] sm:$0xff] 0.0
        $region44: #{tpu_custom_call.1} parent=31 // pred_fallthru
          _
        %v260 = vld [vmem:[%s250] sm:$0xff]
        %v261 = vld [vmem:[%s219] sm:$0xff]
        %v262 = vld [vmem:[#allocation5] sm:$0xff]
        %v263 = vld [vmem:[#allocation5 + $0x8] sm:$0xff]
        %v264 = vld [vmem:[#allocation5 + $0x10] sm:$0xff]
        %v265 = vld [vmem:[#allocation5 + $0x18] sm:$0xff]
        %v266 = vld [vmem:[#allocation5 + $0x20] sm:$0xff]
        %v267 = vld [vmem:[#allocation5 + $0x28] sm:$0xff]
        %v268 = vld [vmem:[#allocation5 + $0x30] sm:$0xff]
        %v269 = vld [vmem:[#allocation5 + $0x38] sm:$0xff]
        %v270 = vld [vmem:[#allocation5 + $0x40] sm:$0xff]
        %v271 = vld [vmem:[#allocation5 + $0x48] sm:$0xff]
        %v272 = vld [vmem:[#allocation5 + $0x50] sm:$0xff]
        %v273 = vld [vmem:[#allocation5 + $0x58] sm:$0xff]
        %v274 = vld [vmem:[#allocation5 + $0x60] sm:$0xff]
        %v275 = vld [vmem:[#allocation5 + $0x68] sm:$0xff]
        %v276 = vld [vmem:[#allocation5 + $0x70] sm:$0xff]
        %v277 = vld [vmem:[#allocation5 + $0x78] sm:$0xff]
        %278 = vmatpush.msra.mxu0 %v277
        %279 = vmatpush.msra.mxu0 %v276
        %280 = vmatpush.msra.mxu0 %v275
        %281 = vmatpush.msra.mxu0 %v274
        %282 = vmatpush.msra.mxu0 %v273
        %283 = vmatpush.msra.mxu0 %v272
        %284 = vmatpush.msra.mxu0 %v271
        %285 = vmatpush.msra.mxu0 %v270
        %286 = vmatpush.msra.mxu0 %v269
        %287 = vmatpush.msra.mxu0 %v268
        %288 = vmatpush.msra.mxu0 %v267
        %289 = vmatpush.msra.mxu0 %v266
        %290 = vmatpush.msra.mxu0 %v265
        %291 = vmatpush.msra.mxu0 %v264
        %292 = vmatpush.msra.mxu0 %v263
        %293 = vmatpush.msra.mxu0 %v262
        %294 = vmatmul.f32.gmra.mxu0 %v261
        %v295 = vpop.f32.mrf.mxu0
        %v296 = vadd.f32 0.0, %v295
        %297 = vdwg.mxu0
        %v298 = vadd.f32 %v260, %v296
        %299 = vst [vmem:[%s250] sm:$0xff] %v298
        // Predicated region
        $region45: #{tpu_custom_call.1} parent=31 // pred_check
          %p300 = pneg %p255
        $region46: #{tpu_custom_call.1} parent=31 // pred_check_branch
          %302 = sbr.rel (%p300) target = $region48
        $region47: #{tpu_custom_call.1} parent=31 // pred_region
          %v303 = vld [vmem:[%s250] sm:$0xff]
          %v304 = vld [vmem:[%s254] sm:$0x1]
          %v306 = vperm.slane %v304, 0
          %v308 = vadd.f32 %v303, %v306
          %v309 = vmax.f32 %v308, 0.0
          %310 = vst [vmem:[%s250] sm:$0xff] %v309
        $region48: #{tpu_custom_call.1} parent=31 // pred_fallthru
          _
        %s311 = sand.u32 %s132, 1
        %s312 = scalar_lea.sflag [#allocation4], %s311
        %s313 = sand.u32 %s132, 1
        %s314 = smul.addr %s313, 8
        %s315 = scalar_lea.vmem [#allocation7], %s314
        // Predicated region
        $region49: #{tpu_custom_call.1} parent=31 // pred_check
          %p316 = pneg %p142
        $region50: #{tpu_custom_call.1} parent=31 // pred_check_branch
          %318 = sbr.rel (%p316) target = $region52
        $region51: #{tpu_custom_call.1} parent=31 // pred_region
          %320 = vsyncadd %s312, 0
          %s321 = sadd.s32 %s27, %s26
          %s322 = smul.addr %s321, 8
          %s323 = scalar_lea.hbm %s3, %s322
          %s325 = sshll.u32 %s315, 4
          %s326 = int_to_ptr.vmem [resolvable:$true] %s325
          %s327 = sshll.u32 %s323, 4
          %s328 = int_to_ptr.hbm [resolvable:$true] %s327
          %330 = dma.vmem_to_hbm [thread:$0]  %s326, 128, %s328, %s312
        $region52: #{tpu_custom_call.1} parent=31 // pred_fallthru
          _
      $region32: #{tpu_custom_call.1} parent=5 // pred_fallthru
        _
      %p331 = scmp.le.s32.totalorder 2, %s16
      // Predicated region
      $region53: #{tpu_custom_call.1} parent=5 // pred_check
        %p332 = pneg %p331
      $region54: #{tpu_custom_call.1} parent=5 // pred_check_branch
        %334 = sbr.rel (%p332) target = $region56
      $region55: #{tpu_custom_call.1} parent=5 // pred_region
        %s335 = ssub.s32 %s16, 2
        // Predicated region
        $region57: #{tpu_custom_call.1} parent=55 // pred_check
          %p336 = pneg %p148
        $region58: #{tpu_custom_call.1} parent=55 // pred_check_branch
          %338 = sbr.rel (%p336) target = $region60
        $region59: #{tpu_custom_call.1} parent=55 // pred_region
          %s339 = sand.u32 %s133, 1
          %s340 = scalar_lea.sflag [#allocation4], %s339
          %s341 = sand.u32 %s133, 1
          %s342 = smul.addr %s341, 8
          %s343 = scalar_lea.vmem [#allocation7], %s342
          %345 = dma.done %s340, 128
        $region60: #{tpu_custom_call.1} parent=55 // pred_fallthru
          _
      $region56: #{tpu_custom_call.1} parent=5 // pred_fallthru
        _
    $region6: #{tpu_custom_call.1} parent=1 // loop_footer
      %s20 = sadd.s32 1, %s16
    $region7: #{tpu_custom_call.1} parent=1 // loop_footer_branch
      %15 = sbr.rel target = $region3
    $region8: #{tpu_custom_call.1} parent=1 // loop_exit
      _
    %346 = vsyncpa [#allocation3], 1
    %s347 = scalar_lea.sflag [#allocation3], 1
    %348 = vsyncpa %s347, 1
    %349 = vsyncpa [#allocation6], 1
    %350 = vsyncpa [#allocation4], 1
    %s351 = scalar_lea.sflag [#allocation4], 1
    %352 = vsyncpa %s351, 1

</llo_original>
